<compile_context>
chip_gen: v6e
topology: v6e:2x2x1
jax: 0.10.0
libtpu: 0.0.40
codegen_flags: <defaults>
</compile_context>

<pallas_src>
import functools

import jax
import jax.numpy as jnp
from jax.experimental import pallas as pl
from jax.experimental.pallas import tpu as pltpu


def _make_movie_kernel(x_ref, o_ref, *, image_off, t_block):
    # x_ref: (1, 1, Lb) for the 4-D path (single image, broadcast over time)
    #        (1, Tb, Lb) for the 5-D path.
    # o_ref: (1, Tb, Lb)
    t0 = pl.program_id(2) * t_block
    t_idx = t0 + jax.lax.broadcasted_iota(jnp.int32, o_ref.shape, dimension=1)
    fill = jnp.asarray(0.5, dtype=o_ref.dtype)
    o_ref[...] = jnp.where(t_idx < image_off, x_ref[...], fill)


def _choose_tiles(T, L, itemsize, budget_bytes):
    """Pick (Tb, Lb) block dims: lane-dense, evenly dividing, ~budget bytes."""
    budget_elems = max(1, budget_bytes // itemsize)
    if T * L <= budget_elems:
        return T, L                       # whole (T, L) slab per batch element
    # Time tile: multiples of 8 sublanes when T divides cleanly, else full T.
    tb = 8 if (T > 8 and T % 8 == 0) else T
    # Lane tile: largest multiple of 128 dividing L that fits the budget.
    if L % 128 != 0 or L <= 128:
        return tb, L                      # full last dim (allowed by Pallas)
    units_total = L // 128
    max_units = max(1, budget_elems // (tb * 128))
    k = min(max_units, units_total)
    while k > 1 and units_total % k != 0:
        k -= 1
    return tb, k * 128


def make_movie(ims: jax.Array, times: int, image_off: int,
               *, block_budget_bytes: int = 2 * 1024 * 1024) -> jax.Array:
    """JAX/Pallas equivalent of MakeMovie(times, image_off).forward(ims)."""
    if ims.ndim == 4:
        B, C, H, W = ims.shape
        L = C * H * W
        x = ims.reshape(B, 1, L)
    elif ims.ndim == 5:
        B, T, C, H, W = ims.shape
        assert T == times, f"T={times} but got input time dimension={T}"
        L = C * H * W
        x = ims.reshape(B, T, L)
    else:
        raise Exception(
            "currently only (bs, C, H, W) or (bs, T, C, H, W) is supported, "
            f"but the input shape={ims.shape}")

    itemsize = jnp.dtype(ims.dtype).itemsize
    Tb, Lb = _choose_tiles(times, L, itemsize, block_budget_bytes)
    nT = times // Tb
    nL = L // Lb
    grid = (B, nL, nT)   # time innermost -> input-block reuse skips blank-frame DMAs

    if ims.ndim == 4:
        # Single image frame, block index constant in t (fetched once per (b, l)).
        in_spec = pl.BlockSpec((1, 1, Lb), lambda b, l, t: (b, 0, l))
    else:
        # Clamp the time block so fully-blank blocks reuse the previous input
        # block (Pallas skips the re-fetch); the kernel masks the stale data.
        last_img_blk = (min(max(image_off, 1), times) - 1) // Tb
        in_spec = pl.BlockSpec(
            (1, Tb, Lb), lambda b, l, t: (b, jnp.minimum(t, last_img_blk), l))
    out_spec = pl.BlockSpec((1, Tb, Lb), lambda b, l, t: (b, t, l))

    kernel = functools.partial(_make_movie_kernel,
                               image_off=image_off, t_block=Tb)

    out_bytes = B * times * L * itemsize
    in_bytes = x.size * itemsize
    # TODO(synk): the PyTorch 5-D path mutates `ims` in place; with buffer
    # donation this could use input_output_aliases to skip copying image frames.
    out_flat = pl.pallas_call(
        kernel,
        out_shape=jax.ShapeDtypeStruct((B, times, L), ims.dtype),
        grid=grid,
        in_specs=[in_spec],
        out_specs=out_spec,
        compiler_params=pltpu.CompilerParams(
            dimension_semantics=("parallel", "parallel", "arbitrary"),
            vmem_limit_bytes=32 * 1024 * 1024),
        cost_estimate=pl.CostEstimate(flops=0, transcendentals=0,
                                      bytes_accessed=in_bytes + out_bytes),
    )(x)
    return out_flat.reshape((B, times, C, H, W))


if __name__ == "__main__":
    key = jax.random.PRNGKey(0)
    B, C, H, W = 2, 4, 16, 16
    times, image_off = 8, 3

    # --- 4-D path: (B, C, H, W) -> (B, T, C, H, W) ---
    x4 = jax.random.uniform(key, (B, C, H, W), dtype=jnp.float32)
    out4 = jax.block_until_ready(make_movie(x4, times, image_off))
    ref4 = jnp.stack(
        [x4] * image_off + [jnp.full_like(x4, 0.5)] * (times - image_off),
        axis=1)
    assert out4.shape == (B, times, C, H, W)
    assert jnp.allclose(out4, ref4)

    # 4-D path again with a tiny block budget to exercise lane tiling.
    out4b = jax.block_until_ready(
        make_movie(x4, times, image_off, block_budget_bytes=8 * 1024))
    assert jnp.allclose(out4b, ref4)

    # --- 5-D path: (B, T, C, H, W), blank out frames >= image_off ---
    x5 = jax.random.uniform(jax.random.PRNGKey(1), (B, times, C, H, W),
                            dtype=jnp.float32)
    out5 = jax.block_until_ready(make_movie(x5, times, image_off))
    ref5 = x5.at[:, image_off:].set(0.5)
    assert out5.shape == (B, times, C, H, W)
    assert jnp.allclose(out5, ref5)

    # 5-D path with time tiling + clamped (skipped) input DMAs for blank blocks.
    T2, off2 = 16, 5
    x5b = jax.random.uniform(jax.random.PRNGKey(2), (B, T2, C, H, W),
                             dtype=jnp.float32)
    out5b = jax.block_until_ready(
        make_movie(x5b, T2, off2, block_budget_bytes=32 * 1024))
    ref5b = x5b.at[:, off2:].set(0.5)
    assert jnp.allclose(out5b, ref5b)

    print("KERNEL_OK")
</pallas_src>

<mosaic_0001>
module attributes {stable_mosaic.version = 11 : i64} {
  func.func @_make_movie_kernel(%arg0: i32, %arg1: i32, %arg2: i32, %arg3: memref<1x1x1024xf32, #tpu.memory_space<vmem>>, %arg4: memref<1x8x1024xf32, #tpu.memory_space<vmem>>) attributes {dimension_semantics = [#tpu.dimension_semantics<parallel>, #tpu.dimension_semantics<parallel>, #tpu.dimension_semantics<arbitrary>], iteration_bounds = array<i64: 2, 1, 1>, scalar_prefetch = 0 : i64, scratch_operands = 0 : i64, tpu.core_type = #tpu.core_type<tc>, window_params = [{transform_indices = @transform_0, window_bounds = array<i64: 1, 1, 1024>}, {transform_indices = @transform_1, window_bounds = array<i64: 1, 8, 1024>}]} {
    %c8_i32 = arith.constant 8 : i32
    %0 = arith.muli %arg2, %c8_i32 : i32
    %1 = tpu.iota {dimensions = array<i32: 1>} : vector<1x8x1024xi32>
    %2 = vector.broadcast %0 : i32 to vector<1x8x1024xi32>
    %3 = arith.addi %2, %1 : vector<1x8x1024xi32>
    %c3_i32 = arith.constant 3 : i32
    %4 = vector.broadcast %c3_i32 : i32 to vector<1x8x1024xi32>
    %5 = arith.cmpi slt, %3, %4 : vector<1x8x1024xi32>
    %c0 = arith.constant 0 : index
    %c0_0 = arith.constant 0 : index
    %c0_1 = arith.constant 0 : index
    %6 = vector.load %arg3[%c0, %c0_0, %c0_1] : memref<1x1x1024xf32, #tpu.memory_space<vmem>>, vector<1x1x1024xf32>
    %cst = arith.constant 5.000000e-01 : f32
    %7 = vector.shape_cast %6 : vector<1x1x1024xf32> to vector<1x1x1024xf32>
    %8 = vector.broadcast %7 : vector<1x1x1024xf32> to vector<1x8x1024xf32>
    %9 = vector.broadcast %cst : f32 to vector<1x8x1024xf32>
    %10 = arith.select %5, %8, %9 : vector<1x8x1024xi1>, vector<1x8x1024xf32>
    %c0_2 = arith.constant 0 : index
    %c0_3 = arith.constant 0 : index
    %c0_4 = arith.constant 0 : index
    %11 = vector.load %arg4[%c0_2, %c0_3, %c0_4] : memref<1x8x1024xf32, #tpu.memory_space<vmem>>, vector<1x8x1024xf32>
    tpu.vector_store %arg4[%c0_2, %c0_3, %c0_4], %10 {strides = array<i32>} : memref<1x8x1024xf32, #tpu.memory_space<vmem>>, vector<1x8x1024xf32>,
    return
  }
  func.func @transform_0(%arg0: i32, %arg1: i32, %arg2: i32) -> (i32, i32, i32) {
    %c0_i32 = arith.constant 0 : i32
    %c0_i32_0 = arith.constant 0 : i32
    return %arg0, %c0_i32, %arg1 : i32, i32, i32
  }
  func.func @transform_1(%arg0: i32, %arg1: i32, %arg2: i32) -> (i32, i32, i32) {
    %c0_i32 = arith.constant 0 : i32
    return %arg0, %arg2, %arg1 : i32, i32, i32
  }
}

</mosaic_0001>

<llo_original>
// kernel: tpu_custom_call.1
$region0: #{tpu_custom_call.1}
  #allocation0 [shape = 'u32[]', space=smem, size = 0x4, offset = 0x4, fixed_abs, tag = 'smem constant byte address 0x4 - core index']
  #allocation1 [shape = 'u32[144,128]{1,0:T(1,128)}', space=vmem, size = 0x12000, scoped, tag = 'internal scratch']
  %s0 = inlined_call_operand.hbm [shape: f32[2,1,1024], index: 0, kind: input, shape index: {}]
  %s1 = inlined_call_operand.hbm [shape: f32[2,8,1024], index: 1, kind: output, shape index: {}]
  %s2 = sld [smem:[#allocation0]]
  $region41: #{tpu_custom_call.1} parent=0
    _
  %s4 = ssub.s32 1, %s2
  %s5 = scalar_select 0, %s4, %s2
  $region1: #{tpu_custom_call.1} parent=0
    #allocation2 [shape = 'u8[8192]{0}', space=vmem, size = 0x2000, scoped, tag = 'input window, operand 0']
    #allocation3 [shape = 's32[2]{0}', space=sflag, size = 0x8, scoped, tag = 'scoped memory for tpu_custom_call.1']
    #allocation4 [shape = 's32[2]{0}', space=sflag, size = 0x8, scoped, tag = 'scoped memory for tpu_custom_call.1']
    #allocation5 [shape = 'u8[65536]{0}', space=vmem, size = 0x10000, scoped, tag = 'output window, operand 0']
    %6 = vsyncpa [#allocation3], 0
    %s7 = scalar_lea.sflag [#allocation3], 1
    %8 = vsyncpa %s7, 0
    %9 = vsyncpa [#allocation4], 0
    %s10 = scalar_lea.sflag [#allocation4], 1
    %11 = vsyncpa %s10, 0
    loop: start=0, step=1, limit=4
    $region2: #{tpu_custom_call.1} parent=1 // loop_pre_header
      _
    $region3: #{tpu_custom_call.1} parent=1 // loop_header
      %s13 = sphi 0, %s17
      %p14 = scmp.ge.s32.totalorder %s13, 4
      %s20 = sphi 0, %s39
      %s21 = sphi 0, %s35
      %s22 = sphi 0, %s31
      %s23 = sphi 0, %s20
      %s24 = sphi 0, %s21
      %s25 = sphi 0, %s22
      %s26 = sphi 0, %s23
      %s27 = sphi 0, %s24
      %s28 = sphi 0, %s25
      %s44 = sphi 0, %s46
      %s47 = sphi 0, %s44
      %s48 = sphi 0, %s47
      %s64 = sphi 0, %s48
      %s74 = sphi 0, %s76
      %s77 = sphi 0, %s74
      %s78 = sphi 0, %s77
      %s94 = sphi 0, %s78
    $region4: #{tpu_custom_call.1} parent=1 // loop_header_branch
      %16 = sbr.rel (%p14) target = $region8
    $region5: #{tpu_custom_call.1} parent=1 // loop_body
      %s18 = ssub.s32 %s13, 1
      %s19 = ssub.s32 %s13, 2
      %s29 = sadd.s32 1, %s22
      %p30 = scmp.ge.s32.totalorder %s29, 1
      %s31 = scalar_select %p30, 0, %s29
      %s32 = sadd.s32 1, %s21
      %s33 = scalar_select %p30, %s32, %s21
      %p34 = scmp.ge.s32.totalorder %s33, 1
      %s35 = scalar_select %p34, 0, %s33
      %s36 = sadd.s32 1, %s20
      %s37 = scalar_select %p34, %s36, %s20
      %p38 = scmp.ge.s32.totalorder %s37, 2
      %s39 = scalar_select %p38, 0, %s37
      %s40 = ssub.s32 %s20, %s39
      %s41 = ssub.s32 %s21, %s35
      %s42 = sor.u32 %s40, %s41
      %p43 = scmp.eq.s32.totalorder %s42, 0
      %s45 = sadd.s32 %s44, 1
      %s46 = scalar_select %p43, %s44, %s45
      %p49 = pneg %p43
      %p50 = scmp.eq.s32.totalorder %s13, 1
      %p51 = por %p49, %p50
      %p52 = scmp.ne.s32.totalorder %s44, %s47
      %p53 = scmp.eq.s32.totalorder %s13, 0
      %p54 = por %p52, %p53
      %p55 = scmp.ne.s32.totalorder %s44, %s47
      %p56 = scmp.eq.s32.totalorder %s18, 1
      %p57 = por %p55, %p56
      %p58 = scmp.ne.s32.totalorder %s47, %s48
      %p59 = scmp.eq.s32.totalorder %s18, 0
      %p60 = por %p58, %p59
      %p61 = scmp.ne.s32.totalorder %s47, %s48
      %p62 = scmp.eq.s32.totalorder %s19, 1
      %p63 = por %p61, %p62
      %p65 = scmp.ne.s32.totalorder %s48, %s64
      %p66 = scmp.eq.s32.totalorder %s19, 0
      %p67 = por %p65, %p66
      %s68 = ssub.s32 %s20, %s39
      %s69 = ssub.s32 %s22, %s31
      %s70 = sor.u32 %s68, %s69
      %s71 = ssub.s32 %s21, %s35
      %s72 = sor.u32 %s70, %s71
      %p73 = scmp.eq.s32.totalorder %s72, 0
      %s75 = sadd.s32 %s74, 1
      %s76 = scalar_select %p73, %s74, %s75
      %p79 = pneg %p73
      %p80 = scmp.eq.s32.totalorder %s13, 1
      %p81 = por %p79, %p80
      %p82 = scmp.ne.s32.totalorder %s74, %s77
      %p83 = scmp.eq.s32.totalorder %s13, 0
      %p84 = por %p82, %p83
      %p85 = scmp.ne.s32.totalorder %s74, %s77
      %p86 = scmp.eq.s32.totalorder %s18, 1
      %p87 = por %p85, %p86
      %p88 = scmp.ne.s32.totalorder %s77, %s78
      %p89 = scmp.eq.s32.totalorder %s18, 0
      %p90 = por %p88, %p89
      %p91 = scmp.ne.s32.totalorder %s77, %s78
      %p92 = scmp.eq.s32.totalorder %s19, 1
      %p93 = por %p91, %p92
      %p95 = scmp.ne.s32.totalorder %s78, %s94
      %p96 = scmp.eq.s32.totalorder %s19, 0
      %p97 = por %p95, %p96
      %p98 = scmp.le.s32.totalorder 1, %s13
      %p99 = scmp.lt.s32.totalorder %s13, 3
      %p100 = pnand %p98, %p99
      %p101 = pneg %p100
      // Predicated region
      $region9: #{tpu_custom_call.1} parent=5 // pred_check
        _
      $region10: #{tpu_custom_call.1} parent=5 // pred_check_branch
        %103 = sbr.rel (%p100) target = $region12
      $region11: #{tpu_custom_call.1} parent=5 // pred_region
        %s104 = ssub.s32 %s13, 1
      $region12: #{tpu_custom_call.1} parent=5 // pred_fallthru
        _
      %p105 = scmp.lt.s32.totalorder %s13, 2
      // Predicated region
      $region13: #{tpu_custom_call.1} parent=5 // pred_check
        %p106 = pneg %p105
      $region14: #{tpu_custom_call.1} parent=5 // pred_check_branch
        %108 = sbr.rel (%p106) target = $region16
      $region15: #{tpu_custom_call.1} parent=5 // pred_region
        // Predicated region
        $region17: #{tpu_custom_call.1} parent=15 // pred_check
          %p109 = pneg %p54
        $region18: #{tpu_custom_call.1} parent=15 // pred_check_branch
          %111 = sbr.rel (%p109) target = $region20
        $region19: #{tpu_custom_call.1} parent=15 // pred_region
          %s112 = sand.u32 %s44, 1
          %s113 = scalar_lea.sflag [#allocation3], %s112
          %s114 = sand.u32 %s44, 1
          %s115 = smul.addr %s114, 8
          %s116 = scalar_lea.vmem [#allocation2], %s115
          %s117 = smul.u32 8, %s21
          %s119 = ssub.s32 128, 128
          %120 = vsyncadd %s113, %s119
          %s121 = smul.addr %s20, 8
          %s122 = sadd.s32 %s117, %s121
          %s123 = smul.addr %s122, 16
          %s124 = scalar_lea.hbm %s0, %s123
          %s126 = sshll.u32 %s116, 4
          %s127 = int_to_ptr.vmem [resolvable:$true] %s126
          %129 = dma.hbm_to_vmem [thread:$0]  %s124, 128, %s127, %s113
        $region20: #{tpu_custom_call.1} parent=15 // pred_fallthru
          _
      $region16: #{tpu_custom_call.1} parent=5 // pred_fallthru
        _
      %p130 = scmp.le.s32.totalorder 1, %s13
      %p131 = scmp.lt.s32.totalorder %s13, 3
      %p132 = pnand %p130, %p131
      %p133 = pneg %p132
      // Predicated region
      $region21: #{tpu_custom_call.1} parent=5 // pred_check
        _
      $region22: #{tpu_custom_call.1} parent=5 // pred_check_branch
        %135 = sbr.rel (%p132) target = $region24
      $region23: #{tpu_custom_call.1} parent=5 // pred_region
        %s136 = ssub.s32 %s13, 1
        %s137 = sand.u32 %s47, 1
        %s138 = scalar_lea.sflag [#allocation3], %s137
        %s139 = sand.u32 %s47, 1
        %s140 = smul.addr %s139, 8
        %s141 = scalar_lea.vmem [#allocation2], %s140
        // Predicated region
        $region25: #{tpu_custom_call.1} parent=23 // pred_check
          %p142 = pneg %p60
        $region26: #{tpu_custom_call.1} parent=23 // pred_check_branch
          %144 = sbr.rel (%p142) target = $region28
        $region27: #{tpu_custom_call.1} parent=23 // pred_region
          %145 = dma.done %s138, 128
        $region28: #{tpu_custom_call.1} parent=23 // pred_fallthru
          _
        %s146 = sand.u32 %s47, 1
        %s147 = scalar_lea.sflag [#allocation3], %s146
        %s148 = sand.u32 %s47, 1
        %s149 = smul.addr %s148, 8
        %s150 = scalar_lea.vmem [#allocation2], %s149
        %p151 = pneg %p60
        %p152 = pneg %p57
        %p153 = pneg %p90
        %p154 = pneg %p87
        %s155 = sand.u32 %s77, 1
        %s156 = scalar_lea.sflag [#allocation4], %s155
        %s157 = sand.u32 %s77, 1
        %s158 = smul.addr %s157, 64
        %s159 = scalar_lea.vmem [#allocation5], %s158
        %s160 = smul.u32 8, %s24
        %s161 = smul.u32 8, %s24
        %s162 = smul.u32 %s25, 8
        %v163 = vlaneseq
        %v164 = vshrl.u32 %v163, 7
        %v165 = vstv %s162
        %v166 = vadd.s32 %v165, %v164
        %vm167 = vcmp.lt.s32.totalorder %v166, 3
        %v168 = vld [vmem:[%s141] sm:$0xff]
        %v170 = vlaneseq
        %v171 = vshrl.u32 %v170, 7
        %v172 = vsub.s32 0, %v171
        %v173 = vrot.slane %v168, %v172
        %v174 = vlaneseq
        %v175 = vshrl.u32 %v174, 7
        %v176 = vsub.s32 1, %v175
        %v177 = vrot.slane %v168, %v176
        %v178 = vlaneseq
        %v179 = vshrl.u32 %v178, 7
        %v180 = vsub.s32 2, %v179
        %v181 = vrot.slane %v168, %v180
        %v182 = vlaneseq
        %v183 = vshrl.u32 %v182, 7
        %v184 = vsub.s32 3, %v183
        %v185 = vrot.slane %v168, %v184
        %v186 = vlaneseq
        %v187 = vshrl.u32 %v186, 7
        %v188 = vsub.s32 4, %v187
        %v189 = vrot.slane %v168, %v188
        %v190 = vlaneseq
        %v191 = vshrl.u32 %v190, 7
        %v192 = vsub.s32 5, %v191
        %v193 = vrot.slane %v168, %v192
        %v194 = vlaneseq
        %v195 = vshrl.u32 %v194, 7
        %v196 = vsub.s32 6, %v195
        %v197 = vrot.slane %v168, %v196
        %v198 = vlaneseq
        %v199 = vshrl.u32 %v198, 7
        %v200 = vsub.s32 7, %v199
        %v201 = vrot.slane %v168, %v200
        %v210 = vsel %vm167, %v173, 0.5
        %v211 = vsel %vm167, %v177, 0.5
        %v212 = vsel %vm167, %v181, 0.5
        %v213 = vsel %vm167, %v185, 0.5
        %v214 = vsel %vm167, %v189, 0.5
        %v215 = vsel %vm167, %v193, 0.5
        %v216 = vsel %vm167, %v197, 0.5
        %v217 = vsel %vm167, %v201, 0.5
        %218 = vst [vmem:[%s159] sm:$0xff] %v210
        %219 = vst [vmem:[%s159 + $0x8] sm:$0xff] %v211
        %220 = vst [vmem:[%s159 + $0x10] sm:$0xff] %v212
        %221 = vst [vmem:[%s159 + $0x18] sm:$0xff] %v213
        %222 = vst [vmem:[%s159 + $0x20] sm:$0xff] %v214
        %223 = vst [vmem:[%s159 + $0x28] sm:$0xff] %v215
        %224 = vst [vmem:[%s159 + $0x30] sm:$0xff] %v216
        %225 = vst [vmem:[%s159 + $0x38] sm:$0xff] %v217
        %s226 = sand.u32 %s77, 1
        %s227 = scalar_lea.sflag [#allocation4], %s226
        %s228 = sand.u32 %s77, 1
        %s229 = smul.addr %s228, 64
        %s230 = scalar_lea.vmem [#allocation5], %s229
        // Predicated region
        $region29: #{tpu_custom_call.1} parent=23 // pred_check
          %p231 = pneg %p87
        $region30: #{tpu_custom_call.1} parent=23 // pred_check_branch
          %233 = sbr.rel (%p231) target = $region32
        $region31: #{tpu_custom_call.1} parent=23 // pred_region
          %s234 = smul.u32 8, %s24
          %s236 = ssub.s32 1024, 1024
          %237 = vsyncadd %s227, %s236
          %s238 = smul.addr %s25, 8
          %s239 = sadd.s32 %s234, %s238
          %s240 = smul.addr %s23, 8
          %s241 = sadd.s32 %s239, %s240
          %s242 = smul.addr %s241, 128
          %s243 = scalar_lea.hbm %s1, %s242
          %s245 = sshll.u32 %s230, 4
          %s246 = int_to_ptr.vmem [resolvable:$true] %s245
          %248 = dma.vmem_to_hbm [thread:$0]  %s246, 1024, %s243, %s227
        $region32: #{tpu_custom_call.1} parent=23 // pred_fallthru
          _
      $region24: #{tpu_custom_call.1} parent=5 // pred_fallthru
        _
      %p249 = scmp.le.s32.totalorder 2, %s13
      // Predicated region
      $region33: #{tpu_custom_call.1} parent=5 // pred_check
        %p250 = pneg %p249
      $region34: #{tpu_custom_call.1} parent=5 // pred_check_branch
        %252 = sbr.rel (%p250) target = $region36
      $region35: #{tpu_custom_call.1} parent=5 // pred_region
        %s253 = ssub.s32 %s13, 2
        // Predicated region
        $region37: #{tpu_custom_call.1} parent=35 // pred_check
          %p254 = pneg %p93
        $region38: #{tpu_custom_call.1} parent=35 // pred_check_branch
          %256 = sbr.rel (%p254) target = $region40
        $region39: #{tpu_custom_call.1} parent=35 // pred_region
          %s257 = sand.u32 %s78, 1
          %s258 = scalar_lea.sflag [#allocation4], %s257
          %s259 = sand.u32 %s78, 1
          %s260 = smul.addr %s259, 64
          %s261 = scalar_lea.vmem [#allocation5], %s260
          %262 = dma.done %s258, 1024
        $region40: #{tpu_custom_call.1} parent=35 // pred_fallthru
          _
      $region36: #{tpu_custom_call.1} parent=5 // pred_fallthru
        _
    $region6: #{tpu_custom_call.1} parent=1 // loop_footer
      %s17 = sadd.s32 1, %s13
    $region7: #{tpu_custom_call.1} parent=1 // loop_footer_branch
      %12 = sbr.rel target = $region3
    $region8: #{tpu_custom_call.1} parent=1 // loop_exit
      _
    %263 = vsyncpa [#allocation3], 1
    %s264 = scalar_lea.sflag [#allocation3], 1
    %265 = vsyncpa %s264, 1
    %266 = vsyncpa [#allocation4], 1
    %s267 = scalar_lea.sflag [#allocation4], 1
    %268 = vsyncpa %s267, 1

</llo_original>
